<compile_context>
chip_gen: v7x
topology: tpu7x:2x2x1
jax: 0.10.0
libtpu: 0.0.40
codegen_flags: <defaults>
</compile_context>

<pallas_src>
import math

import jax
import jax.numpy as jnp
from jax.experimental import pallas as pl
from jax.experimental.pallas import tpu as pltpu

N_FEATURES = 1
N_HIDDEN = 32
N_OUTPUT = 1
LANES = 128


def mlp_kernel(x_ref, p_ref, o_ref):
    # x_ref: (1, Bp)   batch on lanes
    # p_ref: (H, 128)  packed params: col0=w1, col1=b1, col2=w2, [0,3]=b2
    # o_ref: (1, Bp)
    x = x_ref[...]                     # (1, Bp)
    w1 = p_ref[:, 0:1]                 # (H, 1)
    b1 = p_ref[:, 1:2]                 # (H, 1)
    w2 = p_ref[:, 2:3]                 # (H, 1)
    b2 = p_ref[0:1, 3:4]               # (1, 1)

    # hidden = relu(x * w1 + b1): pure VPU, no MXU (K == 1).
    h = jnp.maximum(w1 * x + b1, 0.0)  # (H, Bp)

    # out = sum_H(h * w2) + b2: VPU multiply + XLU sublane reduce (N == 1).
    y = jnp.sum(h * w2, axis=0, keepdims=True) + b2  # (1, Bp)

    o_ref[...] = y.astype(o_ref.dtype)


def pack_params(w1, b1, w2, b2):
    """Pack all parameters into one lane-dense (N_HIDDEN, 128) f32 block.

    w1: (1, H), b1: (1, H), w2: (H, 1), b2: (1, 1)  ->  columns of the block.
    """
    p = jnp.zeros((N_HIDDEN, LANES), jnp.float32)
    p = p.at[:, 0].set(w1.reshape(N_HIDDEN))
    p = p.at[:, 1].set(b1.reshape(N_HIDDEN))
    p = p.at[:, 2].set(w2.reshape(N_HIDDEN))
    p = p.at[0, 3].set(b2.reshape(()))
    return p


def net_forward(x, params):
    """x: (B, 1) f32; params: (N_HIDDEN, 128) packed block. Returns (B, 1) f32."""
    B = x.shape[0]
    Bp = ((B + LANES - 1) // LANES) * LANES  # pad batch up to lane width

    # Transpose batch onto the lane axis and zero-pad 100 -> 128.
    x_t = jnp.zeros((1, Bp), jnp.float32).at[0, :B].set(x[:, 0])

    vmem = pl.BlockSpec(memory_space=pltpu.MemorySpace.VMEM)
    cost = pl.CostEstimate(
        flops=4 * Bp * N_HIDDEN,               # 2 mul-adds per hidden unit per lane
        transcendentals=0,
        bytes_accessed=4 * (Bp + params.size + Bp),
    )

    y = pl.pallas_call(
        mlp_kernel,
        out_shape=jax.ShapeDtypeStruct((1, Bp), jnp.float32),
        in_specs=[vmem, vmem],
        out_specs=vmem,
        cost_estimate=cost,
    )(x_t, params)

    # Drop the padded lanes and restore the (B, 1) PyTorch layout.
    return y[0, :B].reshape(B, N_OUTPUT)


def init_linear_params(key, fan_in, fan_out):
    """PyTorch nn.Linear init: U(-1/sqrt(fan_in), +1/sqrt(fan_in)).
    Weight returned pre-transposed to (fan_in, fan_out)."""
    bound = 1.0 / math.sqrt(fan_in)
    kw, kb = jax.random.split(key)
    w = jax.random.uniform(kw, (fan_in, fan_out), jnp.float32, -bound, bound)
    b = jax.random.uniform(kb, (1, fan_out), jnp.float32, -bound, bound)
    return w, b


if __name__ == "__main__":
    # Shapes from the original script: x = unsqueeze(linspace(-1,1,100), 1)
    # => (100, 1); Net(n_features=1, n_hidden=32, n_output=1).
    batch = 100

    key = jax.random.PRNGKey(0)
    k1, k2 = jax.random.split(key)
    w1, b1 = init_linear_params(k1, N_FEATURES, N_HIDDEN)   # (1,32), (1,32)
    w2, b2 = init_linear_params(k2, N_HIDDEN, N_OUTPUT)     # (32,1), (1,1)
    params = pack_params(w1, b1, w2, b2)

    x = jnp.linspace(-1.0, 1.0, batch, dtype=jnp.float32).reshape(batch, 1)

    out = net_forward(x, params)
    jax.block_until_ready(out)

    # Reference: plain-JAX forward of the same module.
    ref = jnp.maximum(x @ w1 + b1, 0.0) @ w2 + b2
    assert out.shape == (batch, N_OUTPUT)
    assert jnp.allclose(out, ref, atol=1e-5, rtol=1e-5)

    print("KERNEL_OK")
</pallas_src>

<mosaic_0001>
module attributes {stable_mosaic.version = 11 : i64} {
  func.func @mlp_kernel(%arg0: memref<1x128xf32, #tpu.memory_space<vmem>>, %arg1: memref<32x128xf32, #tpu.memory_space<vmem>>, %arg2: memref<1x128xf32, #tpu.memory_space<vmem>>) attributes {dimension_semantics = [], scalar_prefetch = 0 : i64, scratch_operands = 0 : i64, tpu.core_type = #tpu.core_type<tc>} {
    %c0 = arith.constant 0 : index
    %c0_0 = arith.constant 0 : index
    %0 = vector.load %arg0[%c0, %c0_0] : memref<1x128xf32, #tpu.memory_space<vmem>>, vector<1x128xf32>
    %c0_1 = arith.constant 0 : index
    %c0_2 = arith.constant 0 : index
    %1 = vector.load %arg1[%c0_1, %c0_2] : memref<32x128xf32, #tpu.memory_space<vmem>>, vector<32x1xf32>
    %c0_3 = arith.constant 0 : index
    %c1 = arith.constant 1 : index
    %2 = vector.load %arg1[%c0_3, %c1] : memref<32x128xf32, #tpu.memory_space<vmem>>, vector<32x1xf32>
    %c0_4 = arith.constant 0 : index
    %c2 = arith.constant 2 : index
    %3 = vector.load %arg1[%c0_4, %c2] : memref<32x128xf32, #tpu.memory_space<vmem>>, vector<32x1xf32>
    %c0_5 = arith.constant 0 : index
    %c3 = arith.constant 3 : index
    %4 = vector.load %arg1[%c0_5, %c3] : memref<32x128xf32, #tpu.memory_space<vmem>>, vector<1x1xf32>
    %5 = vector.broadcast %1 : vector<32x1xf32> to vector<32x128xf32>
    %6 = vector.broadcast %0 : vector<1x128xf32> to vector<32x128xf32>
    %7 = arith.mulf %5, %6 : vector<32x128xf32>
    %8 = vector.broadcast %2 : vector<32x1xf32> to vector<32x128xf32>
    %9 = arith.addf %7, %8 : vector<32x128xf32>
    %cst = arith.constant 0.000000e+00 : f32
    %10 = vector.broadcast %cst : f32 to vector<32x128xf32>
    %11 = arith.maximumf %9, %10 : vector<32x128xf32>
    %12 = vector.broadcast %3 : vector<32x1xf32> to vector<32x128xf32>
    %13 = arith.mulf %11, %12 : vector<32x128xf32>
    %cst_6 = arith.constant dense<0.000000e+00> : vector<128xf32>
    %14 = vector.multi_reduction <add>, %13, %cst_6 [0] : vector<32x128xf32> to vector<128xf32>
    %15 = vector.shape_cast %14 : vector<128xf32> to vector<1x128xf32>
    %16 = vector.broadcast %4 : vector<1x1xf32> to vector<1x128xf32>
    %17 = arith.addf %15, %16 : vector<1x128xf32>
    %c0_7 = arith.constant 0 : index
    %c0_8 = arith.constant 0 : index
    %18 = vector.load %arg2[%c0_7, %c0_8] : memref<1x128xf32, #tpu.memory_space<vmem>>, vector<1x128xf32>
    tpu.vector_store %arg2[%c0_7, %c0_8], %17 {strides = array<i32>} : memref<1x128xf32, #tpu.memory_space<vmem>>, vector<1x128xf32>,
    return
  }
}

</mosaic_0001>

<llo_original>
// kernel: tpu_custom_call.1
$region0: #{tpu_custom_call.1}
  #allocation0 [shape = 'u32[]', space=smem, size = 0x4, offset = 0x4, fixed_abs, tag = 'smem constant byte address 0x4 - core index']
  #allocation1 [shape = 'u32[144,128]{1,0:T(1,128)}', space=vmem, size = 0x12000, scoped, tag = 'internal scratch']
  %s0 = inlined_call_operand.hbm [shape: f32[1,128], index: 0, kind: input, shape index: {}]
  %s1 = inlined_call_operand.hbm [shape: f32[32,128], index: 1, kind: input, shape index: {}]
  %s2 = inlined_call_operand.hbm [shape: f32[1,128], index: 2, kind: output, shape index: {}]
  %s3 = sld [smem:[#allocation0]]
  $region26: #{tpu_custom_call.1} parent=0
    _
  %s5 = ssub.s32 1, %s3
  %s6 = scalar_select 0, %s5, %s3
  $region1: #{tpu_custom_call.1} parent=0
    #allocation2 [shape = 'u8[512]{0}', space=vmem, size = 0x400, scoped, tag = 'input window, operand 0, single buffered']
    #allocation3 [shape = 's32[1]{0}', space=sflag, size = 0x4, scoped, tag = 'scoped memory for tpu_custom_call.1']
    #allocation4 [shape = 's32[1]{0}', space=sflag, size = 0x4, scoped, tag = 'scoped memory for tpu_custom_call.1']
    #allocation5 [shape = 'u8[16384]{0}', space=vmem, size = 0x4000, scoped, tag = 'input window, operand 1, single buffered']
    #allocation6 [shape = 's32[1]{0}', space=sflag, size = 0x4, scoped, tag = 'scoped memory for tpu_custom_call.1']
    #allocation7 [shape = 'u8[512]{0}', space=vmem, size = 0x400, scoped, tag = 'output window, operand 0, single buffered']
    %7 = vsyncpa [#allocation3], 0
    %8 = vsyncpa [#allocation6], 0
    %9 = vsyncpa [#allocation4], 0
    // Predicated region
    $region2: #{tpu_custom_call.1} parent=1 // pred_check
      _
    $region3: #{tpu_custom_call.1} parent=1 // pred_check_branch
      %11 = sbr.rel (0) target = $region5
    $region4: #{tpu_custom_call.1} parent=1 // pred_region
      %s13 = ssub.s32 16, 16
      %14 = vsyncadd [#allocation3], %s13
      %s16 = sshll.u32 [#allocation2], 4
      %s17 = int_to_ptr.vmem [resolvable:$true] %s16
      %19 = dma.hbm_to_vmem [thread:$0]  %s0, 16, %s17, [#allocation3]
    $region5: #{tpu_custom_call.1} parent=1 // pred_fallthru
      _
    // Predicated region
    $region6: #{tpu_custom_call.1} parent=1 // pred_check
      _
    $region7: #{tpu_custom_call.1} parent=1 // pred_check_branch
      %21 = sbr.rel (0) target = $region9
    $region8: #{tpu_custom_call.1} parent=1 // pred_region
      %s23 = ssub.s32 512, 512
      %24 = vsyncadd [#allocation6], %s23
      %s25 = sshll.u32 [#allocation5], 4
      %s26 = int_to_ptr.vmem [resolvable:$true] %s25
      %31 = dma.hbm_to_vmem [thread:$0]  %s1, 512, %s26, [#allocation6], 128, 128, 8
    $region9: #{tpu_custom_call.1} parent=1 // pred_fallthru
      _
    // Predicated region
    $region10: #{tpu_custom_call.1} parent=1 // pred_check
      _
    $region11: #{tpu_custom_call.1} parent=1 // pred_check_branch
      %33 = sbr.rel (0) target = $region13
    $region12: #{tpu_custom_call.1} parent=1 // pred_region
      %34 = dma.done [#allocation3], 16
    $region13: #{tpu_custom_call.1} parent=1 // pred_fallthru
      _
    // Predicated region
    $region14: #{tpu_custom_call.1} parent=1 // pred_check
      _
    $region15: #{tpu_custom_call.1} parent=1 // pred_check_branch
      %36 = sbr.rel (0) target = $region17
    $region16: #{tpu_custom_call.1} parent=1 // pred_region
      %37 = dma.done [#allocation6], 512
    $region17: #{tpu_custom_call.1} parent=1 // pred_fallthru
      _
    %v38 = vld [vmem:[#allocation2] sm:$0x1]
    %v39 = vld [vmem:[#allocation5] sm:$0xff]
    %v40 = vld [vmem:[#allocation5 + $0x8] sm:$0xff]
    %v41 = vld [vmem:[#allocation5 + $0x10] sm:$0xff]
    %v42 = vld [vmem:[#allocation5 + $0x18] sm:$0xff]
    %v43 = vld [vmem:[#allocation5] sm:$0x1]
    %45 = vset.pattern.permute.xlu0 0
    %46 = vperm.xlu0 %45, %v39
    %v47 = vpop.permute.xlu0 %46
    %50 = vset.pattern.permute.xlu0 0
    %51 = vperm.xlu0 %50, %v40
    %v52 = vpop.permute.xlu0 %51
    %55 = vset.pattern.permute.xlu0 0
    %56 = vperm.xlu0 %55, %v41
    %v57 = vpop.permute.xlu0 %56
    %60 = vset.pattern.permute.xlu0 0
    %61 = vperm.xlu0 %60, %v42
    %v62 = vpop.permute.xlu0 %61
    %v65 = vlaneseq
    %v66 = vshrl.u32 %v65, 7
    %v67 = vsub.s32 0, %v66
    %v68 = vrot.slane %v38, %v67
    %v70 = vmul.f32 %v47, %v68
    %v71 = vmul.f32 %v52, %v68
    %v72 = vmul.f32 %v57, %v68
    %v73 = vmul.f32 %v62, %v68
    %74 = vset.pattern.permute.xlu0 1
    %75 = vperm.xlu0 %74, %v39
    %v76 = vpop.permute.xlu0 %75
    %78 = vset.pattern.permute.xlu0 1
    %79 = vperm.xlu0 %78, %v40
    %v80 = vpop.permute.xlu0 %79
    %82 = vset.pattern.permute.xlu0 1
    %83 = vperm.xlu0 %82, %v41
    %v84 = vpop.permute.xlu0 %83
    %86 = vset.pattern.permute.xlu0 1
    %87 = vperm.xlu0 %86, %v42
    %v88 = vpop.permute.xlu0 %87
    %v90 = vadd.f32 %v70, %v76
    %v91 = vadd.f32 %v71, %v80
    %v92 = vadd.f32 %v72, %v84
    %v93 = vadd.f32 %v73, %v88
    %v94 = vmax.f32 %v90, 0.0
    %v95 = vmax.f32 %v91, 0.0
    %v96 = vmax.f32 %v92, 0.0
    %v97 = vmax.f32 %v93, 0.0
    %98 = vset.pattern.permute.xlu0 2
    %99 = vperm.xlu0 %98, %v39
    %v100 = vpop.permute.xlu0 %99
    %102 = vset.pattern.permute.xlu0 2
    %103 = vperm.xlu0 %102, %v40
    %v104 = vpop.permute.xlu0 %103
    %106 = vset.pattern.permute.xlu0 2
    %107 = vperm.xlu0 %106, %v41
    %v108 = vpop.permute.xlu0 %107
    %110 = vset.pattern.permute.xlu0 2
    %111 = vperm.xlu0 %110, %v42
    %v112 = vpop.permute.xlu0 %111
    %v114 = vmul.f32 %v94, %v100
    %v115 = vmul.f32 %v95, %v104
    %v116 = vmul.f32 %v96, %v108
    %v117 = vmul.f32 %v97, %v112
    %v118 = vadd.f32 %v114, %v115
    %v119 = vadd.f32 %v118, %v116
    %v120 = vadd.f32 %v119, %v117
    %v121 = vrot.slane %v120, 4
    %v122 = vadd.f32 %v120, %v121
    %v123 = vrot.slane %v122, 2
    %v124 = vadd.f32 %v122, %v123
    %v125 = vrot.slane %v124, 1
    %v126 = vadd.f32 %v124, %v125
    %128 = vset.pattern.permute.xlu0 3
    %129 = vperm.xlu0 %128, %v43
    %v130 = vpop.permute.xlu0 %129
    %v132 = vadd.f32 %v126, %v130
    %133 = vst [vmem:[#allocation7] sm:$0x1] %v132
    // Predicated region
    $region18: #{tpu_custom_call.1} parent=1 // pred_check
      _
    $region19: #{tpu_custom_call.1} parent=1 // pred_check_branch
      %135 = sbr.rel (0) target = $region21
    $region20: #{tpu_custom_call.1} parent=1 // pred_region
      %s137 = ssub.s32 16, 16
      %138 = vsyncadd [#allocation4], %s137
      %s140 = sshll.u32 [#allocation7], 4
      %s141 = int_to_ptr.vmem [resolvable:$true] %s140
      %143 = dma.vmem_to_hbm [thread:$0]  %s141, 16, %s2, [#allocation4]
    $region21: #{tpu_custom_call.1} parent=1 // pred_fallthru
      _
    // Predicated region
    $region22: #{tpu_custom_call.1} parent=1 // pred_check
      _
    $region23: #{tpu_custom_call.1} parent=1 // pred_check_branch
      %145 = sbr.rel (0) target = $region25
    $region24: #{tpu_custom_call.1} parent=1 // pred_region
      %146 = dma.done [#allocation4], 16
    $region25: #{tpu_custom_call.1} parent=1 // pred_fallthru
      _
    %147 = vsyncpa [#allocation3], 1
    %148 = vsyncpa [#allocation6], 1
    %149 = vsyncpa [#allocation4], 1

</llo_original>
